<compile_context>
chip_gen: v6e
topology: v6e:2x2x1
jax: 0.10.0
libtpu: 0.0.40
codegen_flags: <defaults>
</compile_context>

<pallas_src>
import jax
import jax.numpy as jnp
from jax.experimental import pallas as pl
from jax.experimental.pallas import tpu as pltpu


# ----------------------------------------------------------------------------
# Helpers
# ----------------------------------------------------------------------------
def _round_up(n, m):
    return ((n + m - 1) // m) * m


def _choose_tb(batch):
    """Batch tile: multiple of 8; cap at 256 rows per grid step."""
    if batch >= 256:
        return 256
    return max(8, _round_up(batch, 8))


def _pad2d(x, rows, cols):
    """Zero-pad a 2-D array up to (rows, cols)."""
    r, c = x.shape
    if r == rows and c == cols:
        return x
    return jnp.pad(x, ((0, rows - r), (0, cols - c)))


# ----------------------------------------------------------------------------
# Kernels
# ----------------------------------------------------------------------------
def _linear_kernel(z_ref, a_ref, wz_ref, wa_ref, o_ref):
    # MXU: [TB, z_dim] @ [z_dim, Dout_pad], f32 accumulation.
    acc = jnp.dot(z_ref[...], wz_ref[...], preferred_element_type=jnp.float32)
    # VPU: action contribution as unrolled broadcast multiply-adds (K is tiny).
    a = a_ref[...]
    wa = wa_ref[...]
    for k in range(a.shape[1]):
        acc = acc + a[:, k:k + 1] * wa[k:k + 1, :]
    o_ref[...] = acc.astype(o_ref.dtype)


def _mlp_kernel(z_ref, a_ref, w1z_ref, w1a_ref, b1_ref,
                w2_ref, b2_ref, w3_ref, b3_ref, o_ref):
    # Layer 1: fused concat via weight split; a-term on the VPU.
    h1 = jnp.dot(z_ref[...], w1z_ref[...], preferred_element_type=jnp.float32)
    a = a_ref[...]
    w1a = w1a_ref[...]
    for k in range(a.shape[1]):
        h1 = h1 + a[:, k:k + 1] * w1a[k:k + 1, :]
    h1 = jnp.maximum(h1 + b1_ref[...], 0.0)
    # Layer 2.
    h2 = jnp.dot(h1, w2_ref[...], preferred_element_type=jnp.float32)
    h2 = jnp.maximum(h2 + b2_ref[...], 0.0)
    # Layer 3.
    h3 = jnp.dot(h2, w3_ref[...], preferred_element_type=jnp.float32)
    o_ref[...] = (h3 + b3_ref[...]).astype(o_ref.dtype)


# ----------------------------------------------------------------------------
# Parameter preparation (split first-layer weight, pad feature dims to 128)
# ----------------------------------------------------------------------------
def prepare_linear_params(w, z_dim):
    """w: [z_dim+action_dim, z_dim] ([in, out]) -> (wz_pad, wa_pad)."""
    out_pad = _round_up(w.shape[1], 128)
    wz = _pad2d(w[:z_dim, :], z_dim, out_pad)
    wa = _pad2d(w[z_dim:, :], w.shape[0] - z_dim, out_pad)
    return wz, wa


def prepare_mlp_params(params, z_dim):
    """params: (w1, b1, w2, b2, w3, b3), wi: [in, out], bi: [1, out]."""
    w1, b1, w2, b2, w3, b3 = params
    hidden = w1.shape[1]
    out_dim = w3.shape[1]
    h_pad = _round_up(hidden, 128)
    out_pad = _round_up(out_dim, 128)
    w1z = _pad2d(w1[:z_dim, :], z_dim, h_pad)
    w1a = _pad2d(w1[z_dim:, :], w1.shape[0] - z_dim, h_pad)
    b1p = _pad2d(b1, 1, h_pad)
    w2p = _pad2d(w2, h_pad, h_pad)          # padded hidden rows are zero
    b2p = _pad2d(b2, 1, h_pad)
    w3p = _pad2d(w3, h_pad, out_pad)
    b3p = _pad2d(b3, 1, out_pad)
    return w1z, w1a, b1p, w2p, b2p, w3p, b3p


# ----------------------------------------------------------------------------
# Wrappers
# ----------------------------------------------------------------------------
def _pad_batch(z, a, tb):
    b = z.shape[0]
    b_pad = _round_up(b, tb)
    if b_pad != b:
        z = jnp.pad(z, ((0, b_pad - b), (0, 0)))
        a = jnp.pad(a, ((0, b_pad - b), (0, 0)))
    return z, a, b_pad


def transition_linear(z, a, prepared):
    """trans_type='linear': y = concat(z, a) @ W (no bias)."""
    wz, wa = prepared
    b, z_dim = z.shape
    action_dim = a.shape[1]
    out_pad = wz.shape[1]
    tb = _choose_tb(b)
    z_p, a_p, b_pad = _pad_batch(z, a, tb)
    grid = (b_pad // tb,)

    flops = 2 * b_pad * (z_dim + action_dim) * out_pad
    bytes_accessed = 4 * (b_pad * (z_dim + action_dim)
                          + (z_dim + action_dim) * out_pad
                          + b_pad * out_pad)

    out = pl.pallas_call(
        _linear_kernel,
        out_shape=jax.ShapeDtypeStruct((b_pad, out_pad), z.dtype),
        grid_spec=pltpu.PrefetchScalarGridSpec(
            num_scalar_prefetch=0,
            grid=grid,
            in_specs=[
                pl.BlockSpec((tb, z_dim), lambda i: (i, 0)),
                pl.BlockSpec((tb, action_dim), lambda i: (i, 0)),
                pl.BlockSpec(wz.shape, lambda i: (0, 0)),   # weights stay resident
                pl.BlockSpec(wa.shape, lambda i: (0, 0)),
            ],
            out_specs=pl.BlockSpec((tb, out_pad), lambda i: (i, 0)),
        ),
        compiler_params=pltpu.CompilerParams(
            dimension_semantics=("parallel",)),
        cost_estimate=pl.CostEstimate(
            flops=flops, transcendentals=0, bytes_accessed=bytes_accessed),
    )(z_p, a_p, wz, wa)
    return out[:b, :z_dim]


def transition_mlp(z, a, prepared):
    """trans_type='mlp': Linear->ReLU->Linear->ReLU->Linear on concat(z, a)."""
    w1z, w1a, b1, w2, b2, w3, b3 = prepared
    b, z_dim = z.shape
    action_dim = a.shape[1]
    h_pad = w1z.shape[1]
    out_pad = w3.shape[1]
    tb = _choose_tb(b)
    z_p, a_p, b_pad = _pad_batch(z, a, tb)
    grid = (b_pad // tb,)

    flops = 2 * b_pad * ((z_dim + action_dim) * h_pad
                         + h_pad * h_pad
                         + h_pad * out_pad)
    bytes_accessed = 4 * (b_pad * (z_dim + action_dim)
                          + (z_dim + action_dim) * h_pad + h_pad
                          + h_pad * h_pad + h_pad
                          + h_pad * out_pad + out_pad
                          + b_pad * out_pad)

    const = lambda i: (0, 0)   # weights/biases: constant index_map, VMEM-resident
    out = pl.pallas_call(
        _mlp_kernel,
        out_shape=jax.ShapeDtypeStruct((b_pad, out_pad), z.dtype),
        grid_spec=pltpu.PrefetchScalarGridSpec(
            num_scalar_prefetch=0,
            grid=grid,
            in_specs=[
                pl.BlockSpec((tb, z_dim), lambda i: (i, 0)),
                pl.BlockSpec((tb, action_dim), lambda i: (i, 0)),
                pl.BlockSpec(w1z.shape, const),
                pl.BlockSpec(w1a.shape, const),
                pl.BlockSpec(b1.shape, const),
                pl.BlockSpec(w2.shape, const),
                pl.BlockSpec(b2.shape, const),
                pl.BlockSpec(w3.shape, const),
                pl.BlockSpec(b3.shape, const),
            ],
            out_specs=pl.BlockSpec((tb, out_pad), lambda i: (i, 0)),
        ),
        compiler_params=pltpu.CompilerParams(
            dimension_semantics=("parallel",)),
        cost_estimate=pl.CostEstimate(
            flops=flops, transcendentals=0, bytes_accessed=bytes_accessed),
    )(z_p, a_p, w1z, w1a, b1, w2, b2, w3, b3)
    return out[:b, :z_dim]


# ----------------------------------------------------------------------------
# Deterministic parameter init (mirrors nn.Linear default ranges)
# ----------------------------------------------------------------------------
def _init_linear(key, fan_in, fan_out, dtype=jnp.float32):
    kw, kb = jax.random.split(key)
    bound = 1.0 / (fan_in ** 0.5)
    w = jax.random.uniform(kw, (fan_in, fan_out), dtype, -bound, bound)
    b = jax.random.uniform(kb, (1, fan_out), dtype, -bound, bound)
    return w, b


if __name__ == "__main__":
    z_dim, action_dim, hidden = 32, 3, 64
    B = 8

    key = jax.random.PRNGKey(0)
    kz, ka, k0, k1, k2, k3 = jax.random.split(key, 6)

    z = jax.random.normal(kz, (B, z_dim), jnp.float32)
    a = jax.random.normal(ka, (B, action_dim), jnp.float32)
    x = jnp.concatenate([z, a], axis=-1)   # reference only

    # --- trans_type='linear' (module default): single bias-free Linear ------
    w_lin, _ = _init_linear(k0, z_dim + action_dim, z_dim)
    lin_params = prepare_linear_params(w_lin, z_dim)
    out_lin = jax.block_until_ready(transition_linear(z, a, lin_params))

    ref_lin = x @ w_lin
    assert out_lin.shape == (B, z_dim)
    assert jnp.allclose(out_lin, ref_lin, atol=1e-4, rtol=1e-5)

    # --- trans_type='mlp' ----------------------------------------------------
    w1, b1 = _init_linear(k1, z_dim + action_dim, hidden)
    w2, b2 = _init_linear(k2, hidden, hidden)
    w3, b3 = _init_linear(k3, hidden, z_dim)
    mlp_params = prepare_mlp_params((w1, b1, w2, b2, w3, b3), z_dim)
    out_mlp = jax.block_until_ready(transition_mlp(z, a, mlp_params))

    h = jnp.maximum(x @ w1 + b1, 0.0)
    h = jnp.maximum(h @ w2 + b2, 0.0)
    ref_mlp = h @ w3 + b3
    assert out_mlp.shape == (B, z_dim)
    assert jnp.allclose(out_mlp, ref_mlp, atol=1e-4, rtol=1e-5)

    print("KERNEL_OK")
</pallas_src>

<mosaic_0001>
module attributes {stable_mosaic.version = 11 : i64} {
  func.func @_linear_kernel(%arg0: i32, %arg1: memref<8x32xf32, #tpu.memory_space<vmem>>, %arg2: memref<8x3xf32, #tpu.memory_space<vmem>>, %arg3: memref<32x128xf32, #tpu.memory_space<vmem>>, %arg4: memref<3x128xf32, #tpu.memory_space<vmem>>, %arg5: memref<8x128xf32, #tpu.memory_space<vmem>>) attributes {dimension_semantics = [#tpu.dimension_semantics<parallel>], iteration_bounds = array<i64: 1>, scalar_prefetch = 0 : i64, scratch_operands = 0 : i64, tpu.core_type = #tpu.core_type<tc>, window_params = [{transform_indices = @transform_0, window_bounds = array<i64: 8, 32>}, {transform_indices = @transform_1, window_bounds = array<i64: 8, 3>}, {pipeline_mode = #tpu.pipeline_mode<synchronous>, transform_indices = @transform_2, window_bounds = array<i64: 32, 128>}, {pipeline_mode = #tpu.pipeline_mode<synchronous>, transform_indices = @transform_3, window_bounds = array<i64: 3, 128>}, {transform_indices = @transform_4, window_bounds = array<i64: 8, 128>}]} {
    %c0 = arith.constant 0 : index
    %c0_0 = arith.constant 0 : index
    %0 = vector.load %arg1[%c0, %c0_0] : memref<8x32xf32, #tpu.memory_space<vmem>>, vector<8x32xf32>
    %c0_1 = arith.constant 0 : index
    %c0_2 = arith.constant 0 : index
    %1 = vector.load %arg3[%c0_1, %c0_2] : memref<32x128xf32, #tpu.memory_space<vmem>>, vector<32x128xf32>
    %cst = arith.constant dense<0.000000e+00> : vector<8x128xf32>
    %2 = tpu.matmul %0, %1, %cst {dimension_numbers = #tpu.dot_dimension_numbers<[1], [0], [0], [1], [0, 0, 1, 1], [], []>} : vector<8x32xf32>, vector<32x128xf32>, vector<8x128xf32> -> vector<8x128xf32>
    %c0_3 = arith.constant 0 : index
    %c0_4 = arith.constant 0 : index
    %3 = vector.load %arg2[%c0_3, %c0_4] : memref<8x3xf32, #tpu.memory_space<vmem>>, vector<8x3xf32>
    %c0_5 = arith.constant 0 : index
    %c0_6 = arith.constant 0 : index
    %4 = vector.load %arg4[%c0_5, %c0_6] : memref<3x128xf32, #tpu.memory_space<vmem>>, vector<3x128xf32>
    %5 = vector.extract_strided_slice %3 {offsets = [0, 0], sizes = [8, 1], strides = [1, 1]} : vector<8x3xf32> to vector<8x1xf32>
    %6 = vector.extract_strided_slice %4 {offsets = [0, 0], sizes = [1, 128], strides = [1, 1]} : vector<3x128xf32> to vector<1x128xf32>
    %7 = vector.broadcast %5 : vector<8x1xf32> to vector<8x128xf32>
    %8 = vector.broadcast %6 : vector<1x128xf32> to vector<8x128xf32>
    %9 = arith.mulf %7, %8 : vector<8x128xf32>
    %10 = arith.addf %2, %9 : vector<8x128xf32>
    %11 = vector.extract_strided_slice %3 {offsets = [0, 1], sizes = [8, 1], strides = [1, 1]} : vector<8x3xf32> to vector<8x1xf32>
    %12 = vector.extract_strided_slice %4 {offsets = [1, 0], sizes = [1, 128], strides = [1, 1]} : vector<3x128xf32> to vector<1x128xf32>
    %13 = vector.broadcast %11 : vector<8x1xf32> to vector<8x128xf32>
    %14 = vector.broadcast %12 : vector<1x128xf32> to vector<8x128xf32>
    %15 = arith.mulf %13, %14 : vector<8x128xf32>
    %16 = arith.addf %10, %15 : vector<8x128xf32>
    %17 = vector.extract_strided_slice %3 {offsets = [0, 2], sizes = [8, 1], strides = [1, 1]} : vector<8x3xf32> to vector<8x1xf32>
    %18 = vector.extract_strided_slice %4 {offsets = [2, 0], sizes = [1, 128], strides = [1, 1]} : vector<3x128xf32> to vector<1x128xf32>
    %19 = vector.broadcast %17 : vector<8x1xf32> to vector<8x128xf32>
    %20 = vector.broadcast %18 : vector<1x128xf32> to vector<8x128xf32>
    %21 = arith.mulf %19, %20 : vector<8x128xf32>
    %22 = arith.addf %16, %21 : vector<8x128xf32>
    %c0_7 = arith.constant 0 : index
    %c0_8 = arith.constant 0 : index
    %23 = vector.load %arg5[%c0_7, %c0_8] : memref<8x128xf32, #tpu.memory_space<vmem>>, vector<8x128xf32>
    tpu.vector_store %arg5[%c0_7, %c0_8], %22 {strides = array<i32>} : memref<8x128xf32, #tpu.memory_space<vmem>>, vector<8x128xf32>,
    return
  }
  func.func @transform_0(%arg0: i32) -> (i32, i32) {
    %c0_i32 = arith.constant 0 : i32
    %c0_i32_0 = arith.constant 0 : i32
    return %arg0, %c0_i32 : i32, i32
  }
  func.func @transform_1(%arg0: i32) -> (i32, i32) {
    %c0_i32 = arith.constant 0 : i32
    %c0_i32_0 = arith.constant 0 : i32
    return %arg0, %c0_i32 : i32, i32
  }
  func.func @transform_2(%arg0: i32) -> (i32, i32) {
    %c0_i32 = arith.constant 0 : i32
    %c0_i32_0 = arith.constant 0 : i32
    %c0_i32_1 = arith.constant 0 : i32
    return %c0_i32, %c0_i32_0 : i32, i32
  }
  func.func @transform_3(%arg0: i32) -> (i32, i32) {
    %c0_i32 = arith.constant 0 : i32
    %c0_i32_0 = arith.constant 0 : i32
    %c0_i32_1 = arith.constant 0 : i32
    return %c0_i32, %c0_i32_0 : i32, i32
  }
  func.func @transform_4(%arg0: i32) -> (i32, i32) {
    %c0_i32 = arith.constant 0 : i32
    %c0_i32_0 = arith.constant 0 : i32
    return %arg0, %c0_i32 : i32, i32
  }
}

</mosaic_0001>

<llo_original>
// kernel: tpu_custom_call.1
$region0: #{tpu_custom_call.1}
  #allocation0 [shape = 'u32[]', space=smem, size = 0x4, offset = 0x4, fixed_abs, tag = 'smem constant byte address 0x4 - core index']
  #allocation1 [shape = 'u32[144,128]{1,0:T(1,128)}', space=vmem, size = 0x12000, scoped, tag = 'internal scratch']
  %s0 = inlined_call_operand.vmem [shape: f32[8,32], index: 0, kind: input, shape index: {}]
  %s1 = inlined_call_operand.vmem [shape: f32[8,3], index: 1, kind: input, shape index: {}]
  %s2 = inlined_call_operand.hbm [shape: f32[32,128], index: 2, kind: input, shape index: {}]
  %s3 = inlined_call_operand.vmem [shape: f32[3,128], index: 3, kind: input, shape index: {}]
  %s4 = inlined_call_operand.hbm [shape: f32[8,128], index: 4, kind: output, shape index: {}]
  %s5 = sld [smem:[#allocation0]]
  $region30: #{tpu_custom_call.1} parent=0
    _
  %s7 = ssub.s32 1, %s5
  %s8 = scalar_select 0, %s7, %s5
  $region1: #{tpu_custom_call.1} parent=0
    #allocation2 [shape = 'u8[16384]{0}', space=vmem, size = 0x4000, scoped, tag = 'input window, operand 2, single buffered']
    #allocation3 [shape = 's32[1]{0}', space=sflag, size = 0x4, scoped, tag = 'scoped memory for tpu_custom_call.1']
    #allocation4 [shape = 's32[1]{0}', space=sflag, size = 0x4, scoped, tag = 'scoped memory for tpu_custom_call.1']
    #allocation5 [shape = 'u8[4096]{0}', space=vmem, size = 0x1000, scoped, tag = 'output window, operand 0, single buffered']
    %9 = vsyncpa [#allocation3], 0
    %10 = vsyncpa [#allocation4], 0
    // Predicated region
    $region2: #{tpu_custom_call.1} parent=1 // pred_check
      _
    $region3: #{tpu_custom_call.1} parent=1 // pred_check_branch
      %12 = sbr.rel (0) target = $region5
    $region4: #{tpu_custom_call.1} parent=1 // pred_region
      _
    $region5: #{tpu_custom_call.1} parent=1 // pred_fallthru
      _
    // Predicated region
    $region6: #{tpu_custom_call.1} parent=1 // pred_check
      _
    $region7: #{tpu_custom_call.1} parent=1 // pred_check_branch
      %14 = sbr.rel (0) target = $region9
    $region8: #{tpu_custom_call.1} parent=1 // pred_region
      _
    $region9: #{tpu_custom_call.1} parent=1 // pred_fallthru
      _
    // Predicated region
    $region10: #{tpu_custom_call.1} parent=1 // pred_check
      _
    $region11: #{tpu_custom_call.1} parent=1 // pred_check_branch
      %16 = sbr.rel (0) target = $region13
    $region12: #{tpu_custom_call.1} parent=1 // pred_region
      %s18 = ssub.s32 512, 512
      %19 = vsyncadd [#allocation3], %s18
      %s20 = sshll.u32 [#allocation2], 4
      %s21 = int_to_ptr.vmem [resolvable:$true] %s20
      %26 = dma.hbm_to_vmem [thread:$0]  %s2, 512, %s21, [#allocation3], 128, 128, 8
    $region13: #{tpu_custom_call.1} parent=1 // pred_fallthru
      _
    // Predicated region
    $region14: #{tpu_custom_call.1} parent=1 // pred_check
      _
    $region15: #{tpu_custom_call.1} parent=1 // pred_check_branch
      %28 = sbr.rel (0) target = $region17
    $region16: #{tpu_custom_call.1} parent=1 // pred_region
      _
    $region17: #{tpu_custom_call.1} parent=1 // pred_fallthru
      _
    // Predicated region
    $region18: #{tpu_custom_call.1} parent=1 // pred_check
      _
    $region19: #{tpu_custom_call.1} parent=1 // pred_check_branch
      %30 = sbr.rel (0) target = $region21
    $region20: #{tpu_custom_call.1} parent=1 // pred_region
      %31 = dma.done [#allocation3], 512
    $region21: #{tpu_custom_call.1} parent=1 // pred_fallthru
      _
    %v32 = vld [vmem:[%s0] sm:$0xff]
    %v33 = vld [vmem:[#allocation2] sm:$0xff]
    %v34 = vld [vmem:[#allocation2 + $0x8] sm:$0xff]
    %v35 = vld [vmem:[#allocation2 + $0x10] sm:$0xff]
    %v36 = vld [vmem:[#allocation2 + $0x18] sm:$0xff]
    %v37 = vld [vmem:[%s1] sm:$0xff]
    %v38 = vld [vmem:[%s3] sm:$0x7]
    %40 = vset.pattern.permute.xlu0 0
    %41 = vperm.xlu0 %40, %v37
    %v42 = vpop.permute.xlu0 %41
    %v44 = vlaneseq
    %v45 = vshrl.u32 %v44, 7
    %v46 = vsub.s32 0, %v45
    %v47 = vrot.slane %v38, %v46
    %v48 = vmul.f32 %v42, %v47
    %vm49 = vcmask 261120
    %v51 = vsel %vm49, %v32, 0
    %53 = vmatprep.subr.mxu0 0.0
    %54 = vmatpush1.msra.mxu0 0.0
    %55 = vmatprep.subr.mxu0 0.0
    %56 = vmatpush1.msra.mxu0 0.0
    %57 = vmatprep.subr.mxu0 0.0
    %58 = vmatpush1.msra.mxu0 0.0
    %59 = vmatprep.subr.mxu0 0.0
    %60 = vmatpush1.msra.mxu0 0.0
    %61 = vmatprep.subr.mxu0 0.0
    %62 = vmatpush1.msra.mxu0 0.0
    %63 = vmatprep.subr.mxu0 0.0
    %64 = vmatpush1.msra.mxu0 0.0
    %65 = vmatprep.subr.mxu0 0.0
    %66 = vmatpush1.msra.mxu0 0.0
    %67 = vmatprep.subr.mxu0 0.0
    %68 = vmatpush1.msra.mxu0 0.0
    %69 = vmatprep.subr.mxu0 0.0
    %70 = vmatpush1.msra.mxu0 0.0
    %71 = vmatprep.subr.mxu0 0.0
    %72 = vmatpush1.msra.mxu0 0.0
    %73 = vmatprep.subr.mxu0 0.0
    %74 = vmatpush1.msra.mxu0 0.0
    %75 = vmatprep.subr.mxu0 0.0
    %76 = vmatpush1.msra.mxu0 0.0
    %77 = vmatprep.subr.mxu0 0.0
    %78 = vmatpush1.msra.mxu0 %v36
    %79 = vmatprep.subr.mxu0 0.0
    %80 = vmatpush1.msra.mxu0 %v35
    %81 = vmatprep.subr.mxu0 0.0
    %82 = vmatpush1.msra.mxu0 %v34
    %83 = vmatprep.subr.mxu0 0.0
    %84 = vmatpush1.msra.mxu0 %v33
    %85 = vmatprep.subr.mxu0 0.0
    %86 = vmatpush2.msra.mxu0 0.0
    %87 = vmatprep.subr.mxu0 0.0
    %88 = vmatpush2.msra.mxu0 0.0
    %89 = vmatprep.subr.mxu0 0.0
    %90 = vmatpush2.msra.mxu0 0.0
    %91 = vmatprep.subr.mxu0 0.0
    %92 = vmatpush2.msra.mxu0 0.0
    %93 = vmatprep.subr.mxu0 0.0
    %94 = vmatpush2.msra.mxu0 0.0
    %95 = vmatprep.subr.mxu0 0.0
    %96 = vmatpush2.msra.mxu0 0.0
    %97 = vmatprep.subr.mxu0 0.0
    %98 = vmatpush2.msra.mxu0 0.0
    %99 = vmatprep.subr.mxu0 0.0
    %100 = vmatpush2.msra.mxu0 0.0
    %101 = vmatprep.subr.mxu0 0.0
    %102 = vmatpush2.msra.mxu0 0.0
    %103 = vmatprep.subr.mxu0 0.0
    %104 = vmatpush2.msra.mxu0 0.0
    %105 = vmatprep.subr.mxu0 0.0
    %106 = vmatpush2.msra.mxu0 0.0
    %107 = vmatprep.subr.mxu0 0.0
    %108 = vmatpush2.msra.mxu0 0.0
    %109 = vmatprep.subr.mxu0 0.0
    %110 = vmatpush2.msra.mxu0 0.0
    %111 = vmatprep.subr.mxu0 0.0
    %112 = vmatpush2.msra.mxu0 0.0
    %113 = vmatprep.subr.mxu0 0.0
    %114 = vmatpush2.msra.mxu0 0.0
    %115 = vmatprep.subr.mxu0 0.0
    %116 = vmatpush2.msra.mxu0 0.0
    %117 = vmatprep.mubr.f32.mxu0 0.0
    %118 = vmatmul.mubr.f32.gmra.mxu0 %v51
    %v119 = vpop.f32.mrf.mxu0
    %v120 = vadd.f32 %v48, %v119
    %v121 = vpop.f32.mrf.mxu0
    %122 = vdwg.mxu0
    %123 = vset.pattern.permute.xlu0 1
    %124 = vperm.xlu0 %123, %v37
    %v125 = vpop.permute.xlu0 %124
    %v127 = vlaneseq
    %v128 = vshrl.u32 %v127, 7
    %v129 = vsub.s32 1, %v128
    %v130 = vrot.slane %v38, %v129
    %v131 = vmul.f32 %v125, %v130
    %v132 = vadd.f32 %v120, %v131
    %133 = vset.pattern.permute.xlu0 2
    %134 = vperm.xlu0 %133, %v37
    %v135 = vpop.permute.xlu0 %134
    %v137 = vlaneseq
    %v138 = vshrl.u32 %v137, 7
    %v139 = vsub.s32 2, %v138
    %v140 = vrot.slane %v38, %v139
    %v141 = vmul.f32 %v135, %v140
    %v142 = vadd.f32 %v132, %v141
    %143 = vst [vmem:[#allocation5] sm:$0xff] %v142
    // Predicated region
    $region22: #{tpu_custom_call.1} parent=1 // pred_check
      _
    $region23: #{tpu_custom_call.1} parent=1 // pred_check_branch
      %145 = sbr.rel (0) target = $region25
    $region24: #{tpu_custom_call.1} parent=1 // pred_region
      %s147 = ssub.s32 128, 128
      %148 = vsyncadd [#allocation4], %s147
      %s150 = sshll.u32 [#allocation5], 4
      %s151 = int_to_ptr.vmem [resolvable:$true] %s150
      %153 = dma.vmem_to_hbm [thread:$0]  %s151, 128, %s4, [#allocation4]
    $region25: #{tpu_custom_call.1} parent=1 // pred_fallthru
      _
    // Predicated region
    $region26: #{tpu_custom_call.1} parent=1 // pred_check
      _
    $region27: #{tpu_custom_call.1} parent=1 // pred_check_branch
      %155 = sbr.rel (0) target = $region29
    $region28: #{tpu_custom_call.1} parent=1 // pred_region
      %156 = dma.done [#allocation4], 128
    $region29: #{tpu_custom_call.1} parent=1 // pred_fallthru
      _
    %157 = vsyncpa [#allocation3], 1
    %158 = vsyncpa [#allocation4], 1

</llo_original>
